<compile_context>
chip_gen: v6e
topology: v6e:2x2x1
jax: 0.10.0
libtpu: 0.0.40
codegen_flags: <defaults>
</compile_context>

<pallas_src>
import functools

import jax
import jax.numpy as jnp
from jax.experimental import pallas as pl
from jax.experimental.pallas import tpu as pltpu

_SUBLANE = 8
_LANE = 128
_VMEM_BUDGET = 40 * 1024 * 1024   # headroom under v7x's 64 MiB physical VMEM
_VMEM_LIMIT = 48 * 1024 * 1024    # explicit scoped-VMEM limit for the kernel
_MAX_TILE_B = 512                 # keeps HBM<->VMEM pipelining for large batches


def _round_up(x, m):
    return ((x + m - 1) // m) * m


def _linear_sigmoid_kernel(x_ref, w_ref, b_ref, o_ref):
    # x_ref: [TB, Ep] bf16, w_ref: [Op, Ep] bf16, b_ref: [1, Op] f32, o_ref: [TB, Op]
    acc = jax.lax.dot_general(
        x_ref[...], w_ref[...],
        dimension_numbers=(((1,), (1,)), ((), ())),   # contract over E -> [TB, Op]
        preferred_element_type=jnp.float32,           # f32 MXU accumulation
    )
    acc = acc + b_ref[...]                            # f32 bias, broadcast over rows
    o_ref[...] = jax.nn.sigmoid(acc).astype(o_ref.dtype)


@functools.partial(jax.jit, static_argnames=("tile_b",))
def spacy_embedding_classifier(features, weight, bias, *, tile_b=None):
    """sigmoid(features @ weight.T + bias); weight in PyTorch [O, E] layout."""
    B, E = features.shape
    O, E_w = weight.shape
    assert E_w == E, (E_w, E)
    assert bias.shape == (O,), bias.shape

    out_dtype = features.dtype
    E_p = _round_up(E, _LANE)     # lane-dense contraction dim
    O_p = _round_up(O, _LANE)     # lane-dense output dim

    in_bytes = jnp.dtype(jnp.bfloat16).itemsize
    out_bytes = jnp.dtype(out_dtype).itemsize

    if tile_b is None:
        # Single-buffered resident weight + f32 bias:
        resident = O_p * E_p * in_bytes + O_p * 4
        # Double-buffered streaming feature/output rows:
        per_row = 2 * (E_p * in_bytes + O_p * out_bytes)
        fit_rows = max(_SUBLANE, (_VMEM_BUDGET - resident) // per_row)
        tile_b = min(_MAX_TILE_B,
                     _round_up(B, _SUBLANE),
                     (fit_rows // _SUBLANE) * _SUBLANE)
        tile_b = max(_SUBLANE, tile_b)
        # TODO(synk): if E*O ever grows too large to keep the weight VMEM-resident,
        # add a K(E)/N(O) reduction grid with an f32 accumulator scratch instead of
        # shrinking tile_b further.
    B_p = _round_up(B, tile_b)

    # Zero-padding is exact: padded E columns contribute 0 to the dot product and
    # padded B rows / O columns are sliced off below.
    x = jnp.pad(features.astype(jnp.bfloat16), ((0, B_p - B), (0, E_p - E)))
    w = jnp.pad(weight.astype(jnp.bfloat16), ((0, O_p - O), (0, E_p - E)))
    b2 = jnp.pad(bias.astype(jnp.float32), (0, O_p - O)).reshape(1, O_p)

    grid = (B_p // tile_b,)
    cost = pl.CostEstimate(
        flops=2 * B_p * E_p * O_p + 4 * B_p * O_p,
        transcendentals=B_p * O_p,                     # sigmoid
        bytes_accessed=(B_p * E_p + O_p * E_p) * in_bytes
                       + O_p * 4 + B_p * O_p * out_bytes,
    )

    out = pl.pallas_call(
        _linear_sigmoid_kernel,
        out_shape=jax.ShapeDtypeStruct((B_p, O_p), out_dtype),
        grid_spec=pl.GridSpec(
            grid=grid,
            in_specs=[
                # Streaming feature tile: default double buffering.
                pl.BlockSpec((tile_b, E_p), lambda i: (i, 0)),
                # Resident weight / bias (constant index_map): single-buffered.
                pl.BlockSpec((O_p, E_p), lambda i: (0, 0),
                             pipeline_mode=pl.Buffered(buffer_count=1)),
                pl.BlockSpec((1, O_p), lambda i: (0, 0),
                             pipeline_mode=pl.Buffered(buffer_count=1)),
            ],
            out_specs=pl.BlockSpec((tile_b, O_p), lambda i: (i, 0)),
        ),
        compiler_params=pltpu.CompilerParams(
            dimension_semantics=("parallel",),
            vmem_limit_bytes=_VMEM_LIMIT,
        ),
        cost_estimate=cost,
    )(x, w, b2)

    return out[:B, :O]


if __name__ == "__main__":
    key = jax.random.PRNGKey(0)
    k_x, k_w, k_b = jax.random.split(key, 3)

    batch = 8
    embedding_dim = 32
    output_len = 16

    features = jax.random.normal(k_x, (batch, embedding_dim), dtype=jnp.float32)
    # Deterministic "Linear" parameters (PyTorch layout: weight [O, E], bias [O]).
    weight = jax.random.normal(k_w, (output_len, embedding_dim), dtype=jnp.float32) * 0.1
    bias = jax.random.normal(k_b, (output_len,), dtype=jnp.float32) * 0.1

    out = spacy_embedding_classifier(features, weight, bias)
    out = jax.block_until_ready(out)

    # Reference in plain f32 JAX (same math as torch.sigmoid(Linear(x))).
    ref = jax.nn.sigmoid(features @ weight.T + bias)
    assert out.shape == (batch, output_len), out.shape
    # bf16 MXU inputs (f32 accumulation) -> relaxed tolerance vs the f32 reference.
    assert jnp.allclose(out, ref, atol=1e-2, rtol=1e-2), float(jnp.max(jnp.abs(out - ref)))

    print("KERNEL_OK")
</pallas_src>

<mosaic_0001>
module attributes {stable_mosaic.version = 11 : i64} {
  func.func @_linear_sigmoid_kernel(%arg0: i32, %arg1: memref<8x128xbf16, #tpu.memory_space<vmem>>, %arg2: memref<128x128xbf16, #tpu.memory_space<vmem>>, %arg3: memref<1x128xf32, #tpu.memory_space<vmem>>, %arg4: memref<8x128xf32, #tpu.memory_space<vmem>>) attributes {dimension_semantics = [#tpu.dimension_semantics<parallel>], iteration_bounds = array<i64: 1>, scalar_prefetch = 0 : i64, scratch_operands = 0 : i64, tpu.core_type = #tpu.core_type<tc>, window_params = [{transform_indices = @transform_0, window_bounds = array<i64: 8, 128>}, {pipeline_mode = #tpu.pipeline_mode<synchronous>, transform_indices = @transform_1, window_bounds = array<i64: 128, 128>}, {pipeline_mode = #tpu.pipeline_mode<synchronous>, transform_indices = @transform_2, window_bounds = array<i64: 1, 128>}, {transform_indices = @transform_3, window_bounds = array<i64: 8, 128>}]} {
    %c0 = arith.constant 0 : index
    %c0_0 = arith.constant 0 : index
    %0 = vector.load %arg1[%c0, %c0_0] : memref<8x128xbf16, #tpu.memory_space<vmem>>, vector<8x128xbf16>
    %c0_1 = arith.constant 0 : index
    %c0_2 = arith.constant 0 : index
    %1 = vector.load %arg2[%c0_1, %c0_2] : memref<128x128xbf16, #tpu.memory_space<vmem>>, vector<128x128xbf16>
    %cst = arith.constant dense<0.000000e+00> : vector<8x128xf32>
    %2 = tpu.matmul %0, %1, %cst {dimension_numbers = #tpu.dot_dimension_numbers<[1], [1], [0], [0], [0, 0, 1, 0], [], []>} : vector<8x128xbf16>, vector<128x128xbf16>, vector<8x128xf32> -> vector<8x128xf32>
    %c0_3 = arith.constant 0 : index
    %c0_4 = arith.constant 0 : index
    %3 = vector.load %arg3[%c0_3, %c0_4] : memref<1x128xf32, #tpu.memory_space<vmem>>, vector<1x128xf32>
    %4 = vector.broadcast %3 : vector<1x128xf32> to vector<8x128xf32>
    %5 = arith.addf %2, %4 : vector<8x128xf32>
    %6 = arith.negf %5 : vector<8x128xf32>
    %7 = math.exp %6 : vector<8x128xf32>
    %cst_5 = arith.constant 1.000000e+00 : f32
    %8 = vector.broadcast %cst_5 : f32 to vector<8x128xf32>
    %9 = arith.addf %8, %7 : vector<8x128xf32>
    %10 = arith.divf %8, %9 : vector<8x128xf32>
    %c0_6 = arith.constant 0 : index
    %c0_7 = arith.constant 0 : index
    %11 = vector.load %arg4[%c0_6, %c0_7] : memref<8x128xf32, #tpu.memory_space<vmem>>, vector<8x128xf32>
    tpu.vector_store %arg4[%c0_6, %c0_7], %10 {strides = array<i32>} : memref<8x128xf32, #tpu.memory_space<vmem>>, vector<8x128xf32>,
    return
  }
  func.func @transform_0(%arg0: i32) -> (i32, i32) {
    %c0_i32 = arith.constant 0 : i32
    %c0_i32_0 = arith.constant 0 : i32
    return %arg0, %c0_i32 : i32, i32
  }
  func.func @transform_1(%arg0: i32) -> (i32, i32) {
    %c0_i32 = arith.constant 0 : i32
    %c0_i32_0 = arith.constant 0 : i32
    %c0_i32_1 = arith.constant 0 : i32
    return %c0_i32, %c0_i32_0 : i32, i32
  }
  func.func @transform_2(%arg0: i32) -> (i32, i32) {
    %c0_i32 = arith.constant 0 : i32
    %c0_i32_0 = arith.constant 0 : i32
    %c0_i32_1 = arith.constant 0 : i32
    return %c0_i32, %c0_i32_0 : i32, i32
  }
  func.func @transform_3(%arg0: i32) -> (i32, i32) {
    %c0_i32 = arith.constant 0 : i32
    %c0_i32_0 = arith.constant 0 : i32
    return %arg0, %c0_i32 : i32, i32
  }
}

</mosaic_0001>

<llo_original>
// kernel: spacy_embedding_classifier.1
$region0: #{spacy_embedding_classifier.1}
  #allocation0 [shape = 'u32[]', space=smem, size = 0x4, offset = 0x4, fixed_abs, tag = 'smem constant byte address 0x4 - core index']
  #allocation1 [shape = 'u32[144,128]{1,0:T(1,128)}', space=vmem, size = 0x12000, scoped, tag = 'internal scratch']
  %s0 = inlined_call_operand.vmem [shape: bf16[8,128], index: 0, kind: input, shape index: {}]
  %s1 = inlined_call_operand.vmem [shape: bf16[128,128], index: 1, kind: input, shape index: {}]
  %s2 = inlined_call_operand.vmem [shape: f32[1,128], index: 2, kind: input, shape index: {}]
  %s3 = inlined_call_operand.hbm [shape: f32[8,128], index: 3, kind: output, shape index: {}]
  %s4 = sld [smem:[#allocation0]]
  $region22: #{spacy_embedding_classifier.1} parent=0
    _
  %s6 = ssub.s32 1, %s4
  %s7 = scalar_select 0, %s6, %s4
  $region1: #{spacy_embedding_classifier.1} parent=0
    #allocation2 [shape = 'u8[4096]{0}', space=vmem, size = 0x1000, scoped, tag = 'output window, operand 0, single buffered']
    #allocation3 [shape = 's32[1]{0}', space=sflag, size = 0x4, scoped, tag = 'scoped memory for spacy_embedding_classifier.1']
    %8 = vsyncpa [#allocation3], 0
    // Predicated region
    $region2: #{spacy_embedding_classifier.1} parent=1 // pred_check
      _
    $region3: #{spacy_embedding_classifier.1} parent=1 // pred_check_branch
      %10 = sbr.rel (0) target = $region5
    $region4: #{spacy_embedding_classifier.1} parent=1 // pred_region
      _
    $region5: #{spacy_embedding_classifier.1} parent=1 // pred_fallthru
      _
    // Predicated region
    $region6: #{spacy_embedding_classifier.1} parent=1 // pred_check
      _
    $region7: #{spacy_embedding_classifier.1} parent=1 // pred_check_branch
      %12 = sbr.rel (0) target = $region9
    $region8: #{spacy_embedding_classifier.1} parent=1 // pred_region
      _
    $region9: #{spacy_embedding_classifier.1} parent=1 // pred_fallthru
      _
    // Predicated region
    $region10: #{spacy_embedding_classifier.1} parent=1 // pred_check
      _
    $region11: #{spacy_embedding_classifier.1} parent=1 // pred_check_branch
      %14 = sbr.rel (0) target = $region13
    $region12: #{spacy_embedding_classifier.1} parent=1 // pred_region
      _
    $region13: #{spacy_embedding_classifier.1} parent=1 // pred_fallthru
      _
    %v16 = vld [vmem:[%s0] sm:$0xf]
    %v17 = vld [vmem:[%s1] sm:$0xf]
    %v18 = vld [vmem:[%s1 + $0x4] sm:$0xf]
    %v19 = vld [vmem:[%s1 + $0x8] sm:$0xf]
    %v20 = vld [vmem:[%s1 + $0xc] sm:$0xf]
    %v21 = vld [vmem:[%s1 + $0x10] sm:$0xf]
    %v22 = vld [vmem:[%s1 + $0x14] sm:$0xf]
    %v23 = vld [vmem:[%s1 + $0x18] sm:$0xf]
    %v24 = vld [vmem:[%s1 + $0x1c] sm:$0xf]
    %v25 = vld [vmem:[%s1 + $0x20] sm:$0xf]
    %v26 = vld [vmem:[%s1 + $0x24] sm:$0xf]
    %v27 = vld [vmem:[%s1 + $0x28] sm:$0xf]
    %v28 = vld [vmem:[%s1 + $0x2c] sm:$0xf]
    %v29 = vld [vmem:[%s1 + $0x30] sm:$0xf]
    %v30 = vld [vmem:[%s1 + $0x34] sm:$0xf]
    %v31 = vld [vmem:[%s1 + $0x38] sm:$0xf]
    %v32 = vld [vmem:[%s1 + $0x3c] sm:$0xf]
    %v33 = vld [vmem:[%s2] sm:$0x1]
    %v35 = vlaneseq
    %v36 = vshrl.u32 %v35, 7
    %v37 = vsub.s32 0, %v36
    %v38 = vrot.slane %v33, %v37
    %v56 = vunpack.c.l.b16 %v17
    %v57 = vunpack.c.l.b16 %v18
    %v58 = vunpack.c.l.b16 %v19
    %v59 = vunpack.c.l.b16 %v20
    %v60 = vunpack.c.l.b16 %v21
    %v61 = vunpack.c.l.b16 %v22
    %v62 = vunpack.c.l.b16 %v23
    %v63 = vunpack.c.l.b16 %v24
    %v64 = vunpack.c.l.b16 %v25
    %v65 = vunpack.c.l.b16 %v26
    %v66 = vunpack.c.l.b16 %v27
    %v67 = vunpack.c.l.b16 %v28
    %v68 = vunpack.c.l.b16 %v29
    %v69 = vunpack.c.l.b16 %v30
    %v70 = vunpack.c.l.b16 %v31
    %v71 = vunpack.c.l.b16 %v32
    %v72 = vpack.c.b16 %v57, %v56
    %v73 = vpack.c.b16 %v59, %v58
    %v74 = vpack.c.b16 %v61, %v60
    %v75 = vpack.c.b16 %v63, %v62
    %v76 = vpack.c.b16 %v65, %v64
    %v77 = vpack.c.b16 %v67, %v66
    %v78 = vpack.c.b16 %v69, %v68
    %v79 = vpack.c.b16 %v71, %v70
    %88 = vmatprep.subr.bf16.mxu0 0
    %89 = vmatpush1.bf16.xpose.msra.mxu0 %v79
    %90 = vmatprep.subr.bf16.mxu0 0
    %91 = vmatpush1.bf16.xpose.msra.mxu0 %v78
    %92 = vmatprep.subr.bf16.mxu0 0
    %93 = vmatpush1.bf16.xpose.msra.mxu0 %v77
    %94 = vmatprep.subr.bf16.mxu0 0
    %95 = vmatpush1.bf16.xpose.msra.mxu0 %v76
    %96 = vmatprep.subr.bf16.mxu0 0
    %97 = vmatpush1.bf16.xpose.msra.mxu0 %v75
    %98 = vmatprep.subr.bf16.mxu0 0
    %99 = vmatpush1.bf16.xpose.msra.mxu0 %v74
    %100 = vmatprep.subr.bf16.mxu0 0
    %101 = vmatpush1.bf16.xpose.msra.mxu0 %v73
    %102 = vmatprep.subr.bf16.mxu0 0
    %103 = vmatpush1.bf16.xpose.msra.mxu0 %v72
    %104 = vmatprep.subr.bf16.mxu0 0
    %105 = vmatpush2.bf16.xpose.msra.mxu0 0
    %106 = vmatprep.subr.bf16.mxu0 0
    %107 = vmatpush2.bf16.xpose.msra.mxu0 0
    %108 = vmatprep.subr.bf16.mxu0 0
    %109 = vmatpush2.bf16.xpose.msra.mxu0 0
    %110 = vmatprep.subr.bf16.mxu0 0
    %111 = vmatpush2.bf16.xpose.msra.mxu0 0
    %112 = vmatprep.subr.bf16.mxu0 0
    %113 = vmatpush2.bf16.xpose.msra.mxu0 0
    %114 = vmatprep.subr.bf16.mxu0 0
    %115 = vmatpush2.bf16.xpose.msra.mxu0 0
    %116 = vmatprep.subr.bf16.mxu0 0
    %117 = vmatpush2.bf16.xpose.msra.mxu0 0
    %118 = vmatprep.subr.bf16.mxu0 0
    %119 = vmatpush2.bf16.xpose.msra.mxu0 0
    %120 = vmatprep.mubr.bf16.mxu0 0
    %121 = vmatmul.mubr.bf16.gmra.mxu0 %v16
    %v122 = vpop.f32.mrf.mxu0
    %v123 = vadd.f32 %v38, %v122
    %v124 = vpop.f32.mrf.mxu0
    %v125 = vpop.f32.mrf.mxu0
    %v126 = vpop.f32.mrf.mxu0
    %127 = vdwg.mxu0
    %v128 = vxor.u32 %v123, 2147483648
    %v129 = vmul.f32 %v128, 1.442695
    %v130 = vpow.pop %v129
    %v131 = vadd.f32 %v130, 1.0
    %v132 = vrcp.pop %v131
    %v133 = vmul.f32 1.0, %v132
    %134 = vst [vmem:[#allocation2] sm:$0xff] %v133
    // Predicated region
    $region14: #{spacy_embedding_classifier.1} parent=1 // pred_check
      _
    $region15: #{spacy_embedding_classifier.1} parent=1 // pred_check_branch
      %136 = sbr.rel (0) target = $region17
    $region16: #{spacy_embedding_classifier.1} parent=1 // pred_region
      %s138 = ssub.s32 128, 128
      %139 = vsyncadd [#allocation3], %s138
      %s141 = sshll.u32 [#allocation2], 4
      %s142 = int_to_ptr.vmem [resolvable:$true] %s141
      %144 = dma.vmem_to_hbm [thread:$0]  %s142, 128, %s3, [#allocation3]
    $region17: #{spacy_embedding_classifier.1} parent=1 // pred_fallthru
      _
    // Predicated region
    $region18: #{spacy_embedding_classifier.1} parent=1 // pred_check
      _
    $region19: #{spacy_embedding_classifier.1} parent=1 // pred_check_branch
      %146 = sbr.rel (0) target = $region21
    $region20: #{spacy_embedding_classifier.1} parent=1 // pred_region
      %147 = dma.done [#allocation3], 128
    $region21: #{spacy_embedding_classifier.1} parent=1 // pred_fallthru
      _
    %148 = vsyncpa [#allocation3], 1

</llo_original>
